<compile_context>
chip_gen: v5e
topology: v5e:2x2
jax: 0.10.0
libtpu: 0.0.40
codegen_flags: <defaults>
</compile_context>

<pallas_src>
import functools

import jax
import jax.numpy as jnp
from jax.experimental import pallas as pl
from jax.experimental.pallas import tpu as pltpu

_LANE = 128
_SUBLANE = 8
_TARGET_BLOCK_ELEMS = 256 * 1024        # ~1 MiB of f32 per block per operand


def _mix_gaussian_noise_kernel(lambd_ref, x_ref, noise_ref, o_ref, *, eps):
    """Elementwise hot path: exp / scale / add noise / add eps / log (f32)."""
    lambd = lambd_ref[0]                                      # scalar (SMEM)
    one_minus_lambd = 1.0 - lambd                             # hoisted once
    x = jnp.exp(x_ref[...].astype(jnp.float32))               # lms.exp()
    z = jnp.exp(lambd * noise_ref[...].astype(jnp.float32))   # exp(N(0, lambd))
    mixed = one_minus_lambd * x + z + eps
    o_ref[...] = jnp.log(mixed).astype(o_ref.dtype)


def _choose_slab(n_elems):
    """Pick a lane-dense 2D view (rows, width, pad) for a flat array.

    Prefers a wide last dim (unmasked, lane-dense stores) and zero padding
    whenever the element count already factors — the common case for NCHW
    spectrogram shapes where H*W (or C*H*W) is a multiple of 128.
    """
    for width in (4096, 2048, 1024, 512, 256, 128):
        if n_elems % width == 0:
            return n_elems // width, width, 0
    # Awkward sizes only: pad up to a (8 x 128) multiple.
    tile = _SUBLANE * _LANE
    padded = ((n_elems + tile - 1) // tile) * tile
    return padded // _LANE, _LANE, padded - n_elems


def _choose_row_tile(rows, width):
    """Row tile sized so one block is ~_TARGET_BLOCK_ELEMS elements."""
    target_rows = max(_SUBLANE, _TARGET_BLOCK_ELEMS // width)
    if rows <= target_rows:
        return rows                       # single block == full row extent
    return (target_rows // _SUBLANE) * _SUBLANE   # multiple of 8 sublanes


def mix_gaussian_noise(lms, lambd, std_normal_noise):
    """Pallas implementation of MixGaussianNoise.forward.

    Args:
      lms: log-mel-spectrogram-like array, NCHW (any shape; op is elementwise).
      lambd: scalar float32, ratio * U[0,1).
      std_normal_noise: standard-normal noise with the same shape as `lms`
        (scaled to std=lambd inside the kernel).
    """
    orig_shape = lms.shape
    dtype = lms.dtype
    eps = float(jnp.finfo(dtype).eps)     # matches torch.finfo(x.dtype).eps

    flat_x = lms.reshape(-1)
    flat_n = std_normal_noise.reshape(-1)
    n_elems = flat_x.shape[0]

    rows, width, pad = _choose_slab(n_elems)
    if pad:
        # Fallback path only. Zero-padded noise contributes exp(0)=1 in the
        # padded region, but those outputs are sliced off below -> harmless.
        flat_x = jnp.pad(flat_x, (0, pad))
        flat_n = jnp.pad(flat_n, (0, pad))
    x2 = flat_x.reshape(rows, width)
    n2 = flat_n.reshape(rows, width)

    row_tile = _choose_row_tile(rows, width)
    grid = (pl.cdiv(rows, row_tile),)     # partial trailing block is masked

    lambd_arr = jnp.asarray(lambd, dtype=jnp.float32).reshape((1,))
    kernel = functools.partial(_mix_gaussian_noise_kernel, eps=eps)

    out2 = pl.pallas_call(
        kernel,
        out_shape=jax.ShapeDtypeStruct((rows, width), dtype),
        grid_spec=pltpu.PrefetchScalarGridSpec(
            num_scalar_prefetch=1,        # lambd lands in SMEM
            grid=grid,
            in_specs=[
                pl.BlockSpec((row_tile, width), lambda i, lambd_ref: (i, 0)),
                pl.BlockSpec((row_tile, width), lambda i, lambd_ref: (i, 0)),
            ],
            out_specs=pl.BlockSpec((row_tile, width),
                                   lambda i, lambd_ref: (i, 0)),
        ),
        compiler_params=pltpu.CompilerParams(
            dimension_semantics=("parallel",)),   # v7x: shard across 2 TCs
    )(lambd_arr, x2, n2)

    out = out2.reshape(-1)
    if pad:
        out = out[:n_elems]
    return out.reshape(orig_shape)


if __name__ == "__main__":
    key = jax.random.PRNGKey(0)
    k_lms, k_lambd, k_noise = jax.random.split(key, 3)

    # Small NCHW log-mel-like input.
    B, C, H, W = 2, 4, 16, 16
    lms = jax.random.normal(k_lms, (B, C, H, W), dtype=jnp.float32) * 0.5 - 1.0

    ratio = 0.2
    # lambd = ratio * np.random.rand()  -> deterministic JAX equivalent
    lambd = ratio * jax.random.uniform(k_lambd, (), dtype=jnp.float32)
    # torch.normal(0, lambd, shape) == lambd * N(0,1); scaling done in-kernel.
    std_noise = jax.random.normal(k_noise, (B, C, H, W), dtype=jnp.float32)

    out = jax.block_until_ready(mix_gaussian_noise(lms, lambd, std_noise))

    # Pure-JAX reference for the same lambd / noise draw.
    ref = jnp.log(
        (1.0 - lambd) * jnp.exp(lms)
        + jnp.exp(lambd * std_noise)
        + jnp.finfo(lms.dtype).eps
    )
    assert out.shape == lms.shape and out.dtype == lms.dtype
    assert jnp.allclose(out, ref, atol=1e-5, rtol=1e-5), "mismatch (main path)"

    # Awkward element count (not a multiple of 128): exercises the pad fallback.
    shape2 = (3, 5, 7, 11)
    lms2 = jax.random.normal(k_lms, shape2, dtype=jnp.float32) * 0.5
    noise2 = jax.random.normal(k_noise, shape2, dtype=jnp.float32)
    out2 = jax.block_until_ready(mix_gaussian_noise(lms2, lambd, noise2))
    ref2 = jnp.log(
        (1.0 - lambd) * jnp.exp(lms2)
        + jnp.exp(lambd * noise2)
        + jnp.finfo(lms2.dtype).eps
    )
    assert jnp.allclose(out2, ref2, atol=1e-5, rtol=1e-5), "mismatch (pad path)"

    print("KERNEL_OK")
</pallas_src>

<mosaic_0001>
module attributes {stable_mosaic.version = 11 : i64} {
  func.func @_mix_gaussian_noise_kernel(%arg0: i32, %arg1: memref<1xf32, #tpu.memory_space<smem>>, %arg2: memref<1x2048xf32, #tpu.memory_space<vmem>>, %arg3: memref<1x2048xf32, #tpu.memory_space<vmem>>, %arg4: memref<1x2048xf32, #tpu.memory_space<vmem>>) attributes {dimension_semantics = [#tpu.dimension_semantics<parallel>], iteration_bounds = array<i64: 1>, scalar_prefetch = 1 : i64, scratch_operands = 0 : i64, tpu.core_type = #tpu.core_type<tc>, window_params = [{transform_indices = @transform_0, window_bounds = array<i64: 1, 2048>}, {transform_indices = @transform_1, window_bounds = array<i64: 1, 2048>}, {transform_indices = @transform_2, window_bounds = array<i64: 1, 2048>}]} {
    %c0 = arith.constant 0 : index
    %0 = memref.load %arg1[%c0] : memref<1xf32, #tpu.memory_space<smem>>
    %cst = arith.constant 1.000000e+00 : f32
    %1 = arith.subf %cst, %0 : f32
    %c0_0 = arith.constant 0 : index
    %c0_1 = arith.constant 0 : index
    %2 = vector.load %arg2[%c0_0, %c0_1] : memref<1x2048xf32, #tpu.memory_space<vmem>>, vector<1x2048xf32>
    %3 = math.exp %2 : vector<1x2048xf32>
    %c0_2 = arith.constant 0 : index
    %c0_3 = arith.constant 0 : index
    %4 = vector.load %arg3[%c0_2, %c0_3] : memref<1x2048xf32, #tpu.memory_space<vmem>>, vector<1x2048xf32>
    %5 = vector.broadcast %0 : f32 to vector<1x2048xf32>
    %6 = arith.mulf %5, %4 : vector<1x2048xf32>
    %7 = math.exp %6 : vector<1x2048xf32>
    %8 = vector.broadcast %1 : f32 to vector<1x2048xf32>
    %9 = arith.mulf %8, %3 : vector<1x2048xf32>
    %10 = arith.addf %9, %7 : vector<1x2048xf32>
    %cst_4 = arith.constant 1.1920929E-7 : f32
    %11 = vector.broadcast %cst_4 : f32 to vector<1x2048xf32>
    %12 = arith.addf %10, %11 : vector<1x2048xf32>
    %13 = math.log %12 : vector<1x2048xf32>
    %c0_5 = arith.constant 0 : index
    %c0_6 = arith.constant 0 : index
    %14 = vector.load %arg4[%c0_5, %c0_6] : memref<1x2048xf32, #tpu.memory_space<vmem>>, vector<1x2048xf32>
    tpu.vector_store %arg4[%c0_5, %c0_6], %13 {strides = array<i32>} : memref<1x2048xf32, #tpu.memory_space<vmem>>, vector<1x2048xf32>,
    return
  }
  func.func @transform_0(%arg0: i32, %arg1: memref<1xf32, #tpu.memory_space<smem>>) -> (i32, i32) {
    %c0_i32 = arith.constant 0 : i32
    %c0_i32_0 = arith.constant 0 : i32
    return %arg0, %c0_i32 : i32, i32
  }
  func.func @transform_1(%arg0: i32, %arg1: memref<1xf32, #tpu.memory_space<smem>>) -> (i32, i32) {
    %c0_i32 = arith.constant 0 : i32
    %c0_i32_0 = arith.constant 0 : i32
    return %arg0, %c0_i32 : i32, i32
  }
  func.func @transform_2(%arg0: i32, %arg1: memref<1xf32, #tpu.memory_space<smem>>) -> (i32, i32) {
    %c0_i32 = arith.constant 0 : i32
    %c0_i32_0 = arith.constant 0 : i32
    return %arg0, %c0_i32 : i32, i32
  }
}

</mosaic_0001>

<llo_original>
// kernel: tpu_custom_call.1
$region0: #{tpu_custom_call.1}
  #allocation0 [shape = 'u32[]', space=smem, size = 0x4, offset = 0x4, fixed_abs, tag = 'smem constant byte address 0x4 - core index']
  #allocation1 [shape = 'u32[72,128]{1,0:T(1,128)}', space=vmem, size = 0x9000, scoped, tag = 'internal scratch']
  #allocation2 [shape = 's32[1]{0}', space=sflag, size = 0x4, scoped, tag = 'scoped memory for tpu_custom_call.1']
  #allocation3 [shape = 'f32[1]{0:T(128)S(6)}', space=smem, size = 0x200, scoped, tag = 'prefetched SMEM operand 0']
  %s0 = inlined_call_operand.<no memory space> [shape: f32[1], index: 0, kind: input, shape index: {}]
  %s1 = inlined_call_operand.hbm [shape: f32[1,2048], index: 1, kind: input, shape index: {}]
  %s2 = inlined_call_operand.hbm [shape: f32[1,2048], index: 2, kind: input, shape index: {}]
  %s3 = inlined_call_operand.hbm [shape: f32[1,2048], index: 3, kind: output, shape index: {}]
  %s4 = sld [smem:[#allocation0]]
  $region26: #{tpu_custom_call.1} parent=0
    _
  %s6 = ssub.s32 1, %s4
  %s7 = scalar_select 0, %s6, %s4
  %8 = sst [smem:[#allocation3]] %s0
  $region1: #{tpu_custom_call.1} parent=0
    #allocation4 [shape = 'u8[8192]{0}', space=vmem, size = 0x2000, scoped, tag = 'input window, operand 1, single buffered']
    #allocation5 [shape = 's32[1]{0}', space=sflag, size = 0x4, scoped, tag = 'scoped memory for tpu_custom_call.1']
    #allocation6 [shape = 's32[1]{0}', space=sflag, size = 0x4, scoped, tag = 'scoped memory for tpu_custom_call.1']
    #allocation7 [shape = 'u8[8192]{0}', space=vmem, size = 0x2000, scoped, tag = 'input window, operand 2, single buffered']
    #allocation8 [shape = 's32[1]{0}', space=sflag, size = 0x4, scoped, tag = 'scoped memory for tpu_custom_call.1']
    #allocation9 [shape = 'u8[8192]{0}', space=vmem, size = 0x2000, scoped, tag = 'output window, operand 0, single buffered']
    %9 = vsyncpa [#allocation5], 0
    %10 = vsyncpa [#allocation8], 0
    %11 = vsyncpa [#allocation6], 0
    // Predicated region
    $region2: #{tpu_custom_call.1} parent=1 // pred_check
      _
    $region3: #{tpu_custom_call.1} parent=1 // pred_check_branch
      %13 = sbr.rel (0) target = $region5
    $region4: #{tpu_custom_call.1} parent=1 // pred_region
      %15 = vsyncadd [#allocation5], 0
      %s17 = sshll.u32 %s1, 4
      %s18 = int_to_ptr.hbm [resolvable:$true] %s17
      %s19 = sshll.u32 [#allocation4], 4
      %s20 = int_to_ptr.vmem [resolvable:$true] %s19
      %22 = dma.hbm_to_vmem [thread:$0]  %s18, 256, %s20, [#allocation5]
    $region5: #{tpu_custom_call.1} parent=1 // pred_fallthru
      _
    // Predicated region
    $region6: #{tpu_custom_call.1} parent=1 // pred_check
      _
    $region7: #{tpu_custom_call.1} parent=1 // pred_check_branch
      %24 = sbr.rel (0) target = $region9
    $region8: #{tpu_custom_call.1} parent=1 // pred_region
      %26 = vsyncadd [#allocation8], 0
      %s28 = sshll.u32 %s2, 4
      %s29 = int_to_ptr.hbm [resolvable:$true] %s28
      %s30 = sshll.u32 [#allocation7], 4
      %s31 = int_to_ptr.vmem [resolvable:$true] %s30
      %33 = dma.hbm_to_vmem [thread:$0]  %s29, 256, %s31, [#allocation8]
    $region9: #{tpu_custom_call.1} parent=1 // pred_fallthru
      _
    // Predicated region
    $region10: #{tpu_custom_call.1} parent=1 // pred_check
      _
    $region11: #{tpu_custom_call.1} parent=1 // pred_check_branch
      %35 = sbr.rel (0) target = $region13
    $region12: #{tpu_custom_call.1} parent=1 // pred_region
      %37 = dma.done [#allocation5], 256
    $region13: #{tpu_custom_call.1} parent=1 // pred_fallthru
      _
    // Predicated region
    $region14: #{tpu_custom_call.1} parent=1 // pred_check
      _
    $region15: #{tpu_custom_call.1} parent=1 // pred_check_branch
      %39 = sbr.rel (0) target = $region17
    $region16: #{tpu_custom_call.1} parent=1 // pred_region
      %41 = dma.done [#allocation8], 256
    $region17: #{tpu_custom_call.1} parent=1 // pred_fallthru
      _
    %s42 = sld [smem:[#allocation3]]
    %s43 = ssub.f32 1.0, %s42
    %v44 = vld [vmem:[#allocation4] sm:$0xff]
    %v45 = vld [vmem:[#allocation4 + $0x8] sm:$0xff]
    %v46 = vmul.f32 %v44, 1.442695
    %v47 = vpow.pop %v46
    %v48 = vmul.f32 %v45, 1.442695
    %v49 = vpow.pop %v48
    %v50 = vld [vmem:[#allocation7] sm:$0xff]
    %v51 = vld [vmem:[#allocation7 + $0x8] sm:$0xff]
    %v52 = vstv %s42
    %v53 = vmul.f32 %v52, %v50
    %v54 = vmul.f32 %v52, %v51
    %v55 = vmul.f32 %v53, 1.442695
    %v56 = vpow.pop %v55
    %v57 = vmul.f32 %v54, 1.442695
    %v58 = vpow.pop %v57
    %v59 = vstv %s43
    %v60 = vmul.f32 %v59, %v47
    %v61 = vmul.f32 %v59, %v49
    %v62 = vadd.f32 %v60, %v56
    %v63 = vadd.f32 %v61, %v58
    %v64 = vadd.f32 %v62, 1.1920929e-07
    %v65 = vadd.f32 %v63, 1.1920929e-07
    %v66 = vlog2.pop %v64
    %v67 = vmul.f32 %v66, 0.6931472
    %v68 = vlog2.pop %v65
    %v69 = vmul.f32 %v68, 0.6931472
    %70 = vst [vmem:[#allocation9] sm:$0xff] %v67
    %71 = vst [vmem:[#allocation9 + $0x8] sm:$0xff] %v69
    // Predicated region
    $region18: #{tpu_custom_call.1} parent=1 // pred_check
      _
    $region19: #{tpu_custom_call.1} parent=1 // pred_check_branch
      %73 = sbr.rel (0) target = $region21
    $region20: #{tpu_custom_call.1} parent=1 // pred_region
      %75 = vsyncadd [#allocation6], 0
      %s77 = sshll.u32 [#allocation9], 4
      %s78 = int_to_ptr.vmem [resolvable:$true] %s77
      %s79 = sshll.u32 %s3, 4
      %s80 = int_to_ptr.hbm [resolvable:$true] %s79
      %82 = dma.vmem_to_hbm [thread:$0]  %s78, 256, %s80, [#allocation6]
    $region21: #{tpu_custom_call.1} parent=1 // pred_fallthru
      _
    // Predicated region
    $region22: #{tpu_custom_call.1} parent=1 // pred_check
      _
    $region23: #{tpu_custom_call.1} parent=1 // pred_check_branch
      %84 = sbr.rel (0) target = $region25
    $region24: #{tpu_custom_call.1} parent=1 // pred_region
      %86 = dma.done [#allocation6], 256
    $region25: #{tpu_custom_call.1} parent=1 // pred_fallthru
      _
    %87 = vsyncpa [#allocation5], 1
    %88 = vsyncpa [#allocation8], 1
    %89 = vsyncpa [#allocation6], 1

</llo_original>
